<compile_context>
chip_gen: v5e
topology: v5e:2x2
jax: 0.10.0
libtpu: 0.0.40
codegen_flags: <defaults>
</compile_context>

<pallas_src>
import functools

import jax
import jax.numpy as jnp
from jax.experimental import pallas as pl
from jax.experimental.pallas import tpu as pltpu


def embed_ln_kernel(p_ref, w_ref, b_ref, g_ref, beta_ref, o_ref, *, e_true):
    """One row tile of patch-projection + bias + LayerNorm.

    p_ref   : (tm, K)     bf16 patch vectors
    w_ref   : (K, E_pad)  bf16 projection weight (zero in padded lanes)
    b/g/beta: (1, E_pad)  f32 (zero in padded lanes)
    o_ref   : (tm, E_pad) f32 (padded lanes written as 0, sliced off outside)
    """
    x = jnp.dot(p_ref[...], w_ref[...], preferred_element_type=jnp.float32)
    x = x + b_ref[...]

    e_pad = x.shape[-1]
    lane = jax.lax.broadcasted_iota(jnp.int32, (1, e_pad), 1)
    mask = (lane < e_true).astype(jnp.float32)
    inv_n = jnp.float32(1.0 / e_true)

    # LayerNorm over the true embed_dim (eps matches nn.LayerNorm default).
    # Padded lanes are exact zeros (zero weight cols + zero bias) but we mask
    # anyway and divide by e_true, not e_pad.
    mean = jnp.sum(x * mask, axis=-1, keepdims=True) * inv_n
    cent = (x - mean) * mask
    var = jnp.sum(cent * cent, axis=-1, keepdims=True) * inv_n
    xn = cent * jax.lax.rsqrt(var + 1e-5)
    o_ref[...] = (xn * g_ref[...] + beta_ref[...]).astype(o_ref.dtype)


def patch_embedding(x, w_conv, b_conv, gamma, beta, patch_size):
    """x: (B, C, D, H, W) f32. Returns (B, N, E) f32, N = (D//p)*(H//p)*(W//p)."""
    B, C, D, H, W = x.shape
    p = patch_size
    E = w_conv.shape[0]
    Dp, Hp, Wp = D // p, H // p, W // p
    # Conv3d with stride == kernel floors the spatial extent.
    x = x[:, :, : Dp * p, : Hp * p, : Wp * p]
    N = Dp * Hp * Wp
    K = C * p * p * p
    M = B * N

    # TODO(synk): for large volumetric inputs, fuse this patch-extraction
    # transpose into the kernel (grid over (B, Dp, Hp) with an in-kernel
    # gather) to avoid an extra full HBM read+write of the activation.
    xp = x.reshape(B, C, Dp, p, Hp, p, Wp, p)
    xp = xp.transpose(0, 2, 4, 6, 1, 3, 5, 7)          # (B, Dp, Hp, Wp, C, p, p, p)
    patches = xp.reshape(M, K).astype(jnp.bfloat16)    # bf16: MXU-native, half HBM

    # Lane-dense output: pad embed dim up to a multiple of 128.
    E_pad = ((E + 127) // 128) * 128
    w_mat = jnp.zeros((K, E_pad), jnp.bfloat16)
    w_mat = w_mat.at[:, :E].set(w_conv.reshape(E, K).T.astype(jnp.bfloat16))

    def pad_row(v):
        r = jnp.zeros((1, E_pad), jnp.float32)
        return r.at[0, :E].set(v.astype(jnp.float32))

    b_row, g_row, beta_row = pad_row(b_conv), pad_row(gamma), pad_row(beta)

    # Row tile: as large as reasonable (multiple of 8), but keep >= 2 grid
    # steps so v7x's second TensorCore is used, and bound double-buffered
    # VMEM use against the smallest budget (v7x: 64 MiB phys / 32 MiB scoped).
    tm = min(512, max(8, ((-(-M // 2) + 7) // 8) * 8))
    while tm > 8 and 2 * (tm * K * 2 + tm * E_pad * 4) + 2 * K * E_pad * 2 > (24 << 20):
        tm //= 2
    tm = max(8, (tm // 8) * 8)

    M_pad = ((M + tm - 1) // tm) * tm
    if M_pad != M:
        patches = jnp.pad(patches, ((0, M_pad - M), (0, 0)))
    grid = M_pad // tm

    kernel = functools.partial(embed_ln_kernel, e_true=E)

    # Output kept f32 to match the module's semantics; switch out_shape dtype
    # to bf16 if the downstream transformer consumes bf16 activations.
    out = pl.pallas_call(
        kernel,
        out_shape=jax.ShapeDtypeStruct((M_pad, E_pad), jnp.float32),
        grid_spec=pltpu.PrefetchScalarGridSpec(
            num_scalar_prefetch=0,
            grid=(grid,),
            in_specs=[
                pl.BlockSpec((tm, K), lambda i: (i, 0)),
                pl.BlockSpec((K, E_pad), lambda i: (0, 0)),   # resident weight
                pl.BlockSpec((1, E_pad), lambda i: (0, 0)),
                pl.BlockSpec((1, E_pad), lambda i: (0, 0)),
                pl.BlockSpec((1, E_pad), lambda i: (0, 0)),
            ],
            out_specs=pl.BlockSpec((tm, E_pad), lambda i: (i, 0)),
        ),
        compiler_params=pltpu.CompilerParams(
            dimension_semantics=("parallel",)),
    )(patches, w_mat, b_row, g_row, beta_row)

    return out[:M, :E].reshape(B, N, E)


if __name__ == "__main__":
    # Module defaults: patch_size=4, in_chans=1, embed_dim=96, norm=LayerNorm
    patch_size, in_chans, embed_dim = 4, 1, 96
    B, D, H, W = 2, 8, 8, 8   # small volumetric input, divisible by patch_size

    key = jax.random.PRNGKey(0)
    k_x, k_w, k_b = jax.random.split(key, 3)

    x = jax.random.normal(k_x, (B, in_chans, D, H, W), dtype=jnp.float32)
    # Conv3d weight: (embed_dim, in_chans, p, p, p); deterministic init
    w_conv = jax.random.normal(
        k_w, (embed_dim, in_chans, patch_size, patch_size, patch_size),
        dtype=jnp.float32) * 0.02
    b_conv = jax.random.normal(k_b, (embed_dim,), dtype=jnp.float32) * 0.01
    # LayerNorm params (PyTorch init: ones / zeros)
    gamma = jnp.ones((embed_dim,), dtype=jnp.float32)
    beta = jnp.zeros((embed_dim,), dtype=jnp.float32)

    out = patch_embedding(x, w_conv, b_conv, gamma, beta, patch_size)
    jax.block_until_ready(out)

    # Pure f32 JAX reference (exact module semantics); the kernel uses bf16
    # matmul inputs, so compare with a bf16-appropriate tolerance.
    Dp, Hp, Wp = D // patch_size, H // patch_size, W // patch_size
    xp = x.reshape(B, in_chans, Dp, patch_size, Hp, patch_size, Wp, patch_size)
    xp = xp.transpose(0, 2, 4, 6, 1, 3, 5, 7).reshape(B, Dp * Hp * Wp, -1)
    ref = xp @ w_conv.reshape(embed_dim, -1).T + b_conv
    mu = ref.mean(-1, keepdims=True)
    var = ((ref - mu) ** 2).mean(-1, keepdims=True)
    ref = (ref - mu) / jnp.sqrt(var + 1e-5) * gamma + beta

    assert out.shape == (B, Dp * Hp * Wp, embed_dim)
    err = float(jnp.abs(out - ref).max())
    assert jnp.allclose(out, ref, atol=5e-2, rtol=5e-2), err

    print("KERNEL_OK")
</pallas_src>

<mosaic_0001>
module attributes {stable_mosaic.version = 11 : i64} {
  func.func @embed_ln_kernel(%arg0: i32, %arg1: memref<8x64xbf16, #tpu.memory_space<vmem>>, %arg2: memref<64x128xbf16, #tpu.memory_space<vmem>>, %arg3: memref<1x128xf32, #tpu.memory_space<vmem>>, %arg4: memref<1x128xf32, #tpu.memory_space<vmem>>, %arg5: memref<1x128xf32, #tpu.memory_space<vmem>>, %arg6: memref<8x128xf32, #tpu.memory_space<vmem>>) attributes {dimension_semantics = [#tpu.dimension_semantics<parallel>], iteration_bounds = array<i64: 2>, scalar_prefetch = 0 : i64, scratch_operands = 0 : i64, tpu.core_type = #tpu.core_type<tc>, window_params = [{transform_indices = @transform_0, window_bounds = array<i64: 8, 64>}, {pipeline_mode = #tpu.pipeline_mode<synchronous>, transform_indices = @transform_1, window_bounds = array<i64: 64, 128>}, {pipeline_mode = #tpu.pipeline_mode<synchronous>, transform_indices = @transform_2, window_bounds = array<i64: 1, 128>}, {pipeline_mode = #tpu.pipeline_mode<synchronous>, transform_indices = @transform_3, window_bounds = array<i64: 1, 128>}, {pipeline_mode = #tpu.pipeline_mode<synchronous>, transform_indices = @transform_4, window_bounds = array<i64: 1, 128>}, {transform_indices = @transform_5, window_bounds = array<i64: 8, 128>}]} {
    %c0 = arith.constant 0 : index
    %c0_0 = arith.constant 0 : index
    %0 = vector.load %arg1[%c0, %c0_0] : memref<8x64xbf16, #tpu.memory_space<vmem>>, vector<8x64xbf16>
    %c0_1 = arith.constant 0 : index
    %c0_2 = arith.constant 0 : index
    %1 = vector.load %arg2[%c0_1, %c0_2] : memref<64x128xbf16, #tpu.memory_space<vmem>>, vector<64x128xbf16>
    %cst = arith.constant dense<0.000000e+00> : vector<8x128xf32>
    %2 = tpu.matmul %0, %1, %cst {dimension_numbers = #tpu.dot_dimension_numbers<[1], [0], [0], [1], [0, 0, 1, 1], [], []>} : vector<8x64xbf16>, vector<64x128xbf16>, vector<8x128xf32> -> vector<8x128xf32>
    %c0_3 = arith.constant 0 : index
    %c0_4 = arith.constant 0 : index
    %3 = vector.load %arg3[%c0_3, %c0_4] : memref<1x128xf32, #tpu.memory_space<vmem>>, vector<1x128xf32>
    %4 = vector.broadcast %3 : vector<1x128xf32> to vector<8x128xf32>
    %5 = arith.addf %2, %4 : vector<8x128xf32>
    %6 = tpu.iota {dimensions = array<i32: 1>} : vector<1x128xi32>
    %c96_i32 = arith.constant 96 : i32
    %7 = vector.broadcast %c96_i32 : i32 to vector<1x128xi32>
    %8 = arith.cmpi slt, %6, %7 : vector<1x128xi32>
    %9 = arith.extui %8 : vector<1x128xi1> to vector<1x128xi32>
    %10 = arith.sitofp %9 : vector<1x128xi32> to vector<1x128xf32>
    %11 = vector.broadcast %10 : vector<1x128xf32> to vector<8x128xf32>
    %12 = arith.mulf %5, %11 : vector<8x128xf32>
    %cst_5 = arith.constant dense<0.000000e+00> : vector<8xf32>
    %13 = vector.multi_reduction <add>, %12, %cst_5 [1] : vector<8x128xf32> to vector<8xf32>
    %14 = vector.shape_cast %13 : vector<8xf32> to vector<8x1xf32>
    %cst_6 = arith.constant 0.010416667 : f32
    %15 = vector.broadcast %cst_6 : f32 to vector<8x1xf32>
    %16 = arith.mulf %14, %15 : vector<8x1xf32>
    %17 = vector.broadcast %16 : vector<8x1xf32> to vector<8x128xf32>
    %18 = arith.subf %5, %17 : vector<8x128xf32>
    %19 = vector.broadcast %10 : vector<1x128xf32> to vector<8x128xf32>
    %20 = arith.mulf %18, %19 : vector<8x128xf32>
    %21 = arith.mulf %20, %20 : vector<8x128xf32>
    %cst_7 = arith.constant dense<0.000000e+00> : vector<8xf32>
    %22 = vector.multi_reduction <add>, %21, %cst_7 [1] : vector<8x128xf32> to vector<8xf32>
    %23 = vector.shape_cast %22 : vector<8xf32> to vector<8x1xf32>
    %cst_8 = arith.constant 0.010416667 : f32
    %24 = vector.broadcast %cst_8 : f32 to vector<8x1xf32>
    %25 = arith.mulf %23, %24 : vector<8x1xf32>
    %cst_9 = arith.constant 9.99999974E-6 : f32
    %26 = vector.broadcast %cst_9 : f32 to vector<8x1xf32>
    %27 = arith.addf %25, %26 : vector<8x1xf32>
    %28 = math.rsqrt %27 : vector<8x1xf32>
    %29 = vector.broadcast %28 : vector<8x1xf32> to vector<8x128xf32>
    %30 = arith.mulf %20, %29 : vector<8x128xf32>
    %c0_10 = arith.constant 0 : index
    %c0_11 = arith.constant 0 : index
    %31 = vector.load %arg4[%c0_10, %c0_11] : memref<1x128xf32, #tpu.memory_space<vmem>>, vector<1x128xf32>
    %32 = vector.broadcast %31 : vector<1x128xf32> to vector<8x128xf32>
    %33 = arith.mulf %30, %32 : vector<8x128xf32>
    %c0_12 = arith.constant 0 : index
    %c0_13 = arith.constant 0 : index
    %34 = vector.load %arg5[%c0_12, %c0_13] : memref<1x128xf32, #tpu.memory_space<vmem>>, vector<1x128xf32>
    %35 = vector.broadcast %34 : vector<1x128xf32> to vector<8x128xf32>
    %36 = arith.addf %33, %35 : vector<8x128xf32>
    %c0_14 = arith.constant 0 : index
    %c0_15 = arith.constant 0 : index
    %37 = vector.load %arg6[%c0_14, %c0_15] : memref<8x128xf32, #tpu.memory_space<vmem>>, vector<8x128xf32>
    tpu.vector_store %arg6[%c0_14, %c0_15], %36 {strides = array<i32>} : memref<8x128xf32, #tpu.memory_space<vmem>>, vector<8x128xf32>,
    return
  }
  func.func @transform_0(%arg0: i32) -> (i32, i32) {
    %c0_i32 = arith.constant 0 : i32
    %c0_i32_0 = arith.constant 0 : i32
    return %arg0, %c0_i32 : i32, i32
  }
  func.func @transform_1(%arg0: i32) -> (i32, i32) {
    %c0_i32 = arith.constant 0 : i32
    %c0_i32_0 = arith.constant 0 : i32
    %c0_i32_1 = arith.constant 0 : i32
    return %c0_i32, %c0_i32_0 : i32, i32
  }
  func.func @transform_2(%arg0: i32) -> (i32, i32) {
    %c0_i32 = arith.constant 0 : i32
    %c0_i32_0 = arith.constant 0 : i32
    %c0_i32_1 = arith.constant 0 : i32
    return %c0_i32, %c0_i32_0 : i32, i32
  }
  func.func @transform_3(%arg0: i32) -> (i32, i32) {
    %c0_i32 = arith.constant 0 : i32
    %c0_i32_0 = arith.constant 0 : i32
    %c0_i32_1 = arith.constant 0 : i32
    return %c0_i32, %c0_i32_0 : i32, i32
  }
  func.func @transform_4(%arg0: i32) -> (i32, i32) {
    %c0_i32 = arith.constant 0 : i32
    %c0_i32_0 = arith.constant 0 : i32
    %c0_i32_1 = arith.constant 0 : i32
    return %c0_i32, %c0_i32_0 : i32, i32
  }
  func.func @transform_5(%arg0: i32) -> (i32, i32) {
    %c0_i32 = arith.constant 0 : i32
    %c0_i32_0 = arith.constant 0 : i32
    return %arg0, %c0_i32 : i32, i32
  }
}

</mosaic_0001>

<llo_original>
// kernel: tpu_custom_call.1
$region0: #{tpu_custom_call.1}
  #allocation0 [shape = 'u32[]', space=smem, size = 0x4, offset = 0x4, fixed_abs, tag = 'smem constant byte address 0x4 - core index']
  #allocation1 [shape = 'u32[72,128]{1,0:T(1,128)}', space=vmem, size = 0x9000, scoped, tag = 'internal scratch']
  %s0 = inlined_call_operand.hbm [shape: bf16[16,64], index: 0, kind: input, shape index: {}]
  %s1 = inlined_call_operand.hbm [shape: bf16[64,128], index: 1, kind: input, shape index: {}]
  %s2 = inlined_call_operand.vmem [shape: f32[1,128], index: 2, kind: input, shape index: {}]
  %s3 = inlined_call_operand.vmem [shape: f32[1,128], index: 3, kind: input, shape index: {}]
  %s4 = inlined_call_operand.vmem [shape: f32[1,128], index: 4, kind: input, shape index: {}]
  %s5 = inlined_call_operand.hbm [shape: f32[16,128], index: 5, kind: output, shape index: {}]
  %s6 = sld [smem:[#allocation0]]
  $region61: #{tpu_custom_call.1} parent=0
    _
  %s8 = ssub.s32 1, %s6
  %s9 = scalar_select 0, %s8, %s6
  $region1: #{tpu_custom_call.1} parent=0
    #allocation2 [shape = 'u8[4096]{0}', space=vmem, size = 0x1000, scoped, tag = 'input window, operand 0']
    #allocation3 [shape = 's32[2]{0}', space=sflag, size = 0x8, scoped, tag = 'scoped memory for tpu_custom_call.1']
    #allocation4 [shape = 's32[2]{0}', space=sflag, size = 0x8, scoped, tag = 'scoped memory for tpu_custom_call.1']
    #allocation5 [shape = 'u8[16384]{0}', space=vmem, size = 0x4000, scoped, tag = 'input window, operand 1, single buffered']
    #allocation6 [shape = 's32[1]{0}', space=sflag, size = 0x4, scoped, tag = 'scoped memory for tpu_custom_call.1']
    #allocation7 [shape = 'u8[8192]{0}', space=vmem, size = 0x2000, scoped, tag = 'output window, operand 0']
    %10 = vsyncpa [#allocation3], 0
    %s11 = scalar_lea.sflag [#allocation3], 1
    %12 = vsyncpa %s11, 0
    %13 = vsyncpa [#allocation6], 0
    %14 = vsyncpa [#allocation4], 0
    %s15 = scalar_lea.sflag [#allocation4], 1
    %16 = vsyncpa %s15, 0
    loop: start=0, step=1, limit=4
    $region2: #{tpu_custom_call.1} parent=1 // loop_pre_header
      _
    $region3: #{tpu_custom_call.1} parent=1 // loop_header
      %s18 = sphi 0, %s22
      %p19 = scmp.ge.s32.totalorder %s18, 4
      %s28 = sphi 0, %s30
      %s31 = sphi 0, %s28
      %s32 = sphi 0, %s31
      %s48 = sphi 0, %s32
      %s52 = sphi 0, %s52
      %s54 = sphi 0, %s52
      %s55 = sphi 0, %s54
      %s69 = sphi 0, %s55
      %s73 = sphi 0, %s73
      %s75 = sphi 0, %s73
      %s76 = sphi 0, %s75
      %s90 = sphi 0, %s76
      %s94 = sphi 0, %s94
      %s96 = sphi 0, %s94
      %s97 = sphi 0, %s96
      %s111 = sphi 0, %s97
      %s115 = sphi 0, %s115
      %s117 = sphi 0, %s115
      %s118 = sphi 0, %s117
      %s132 = sphi 0, %s118
      %s138 = sphi 0, %s140
      %s141 = sphi 0, %s138
      %s142 = sphi 0, %s141
      %s158 = sphi 0, %s142
    $region4: #{tpu_custom_call.1} parent=1 // loop_header_branch
      %21 = sbr.rel (%p19) target = $region8
    $region5: #{tpu_custom_call.1} parent=1 // loop_body
      %s23 = ssub.s32 %s18, 1
      %s24 = ssub.s32 %s18, 2
      %s25 = sadd.s32 %s18, 1
      %s26 = ssub.s32 %s18, %s25
      %p27 = scmp.eq.s32.totalorder %s26, 0
      %s29 = sadd.s32 %s28, 1
      %s30 = scalar_select %p27, %s28, %s29
      %p33 = pneg %p27
      %p34 = scmp.eq.s32.totalorder %s18, 1
      %p35 = por %p33, %p34
      %p36 = scmp.ne.s32.totalorder %s28, %s31
      %p37 = scmp.eq.s32.totalorder %s18, 0
      %p38 = por %p36, %p37
      %p39 = scmp.ne.s32.totalorder %s28, %s31
      %p40 = scmp.eq.s32.totalorder %s23, 1
      %p41 = por %p39, %p40
      %p42 = scmp.ne.s32.totalorder %s31, %s32
      %p43 = scmp.eq.s32.totalorder %s23, 0
      %p44 = por %p42, %p43
      %p45 = scmp.ne.s32.totalorder %s31, %s32
      %p46 = scmp.eq.s32.totalorder %s24, 1
      %p47 = por %p45, %p46
      %p49 = scmp.ne.s32.totalorder %s32, %s48
      %p50 = scmp.eq.s32.totalorder %s24, 0
      %p51 = por %p49, %p50
      %s53 = sadd.s32 %s52, 1
      %p56 = scmp.eq.s32.totalorder %s18, 1
      %p57 = scmp.ne.s32.totalorder %s52, %s54
      %p58 = scmp.eq.s32.totalorder %s18, 0
      %p59 = por %p57, %p58
      %p60 = scmp.ne.s32.totalorder %s52, %s54
      %p61 = scmp.eq.s32.totalorder %s23, 1
      %p62 = por %p60, %p61
      %p63 = scmp.ne.s32.totalorder %s54, %s55
      %p64 = scmp.eq.s32.totalorder %s23, 0
      %p65 = por %p63, %p64
      %p66 = scmp.ne.s32.totalorder %s54, %s55
      %p67 = scmp.eq.s32.totalorder %s24, 1
      %p68 = por %p66, %p67
      %p70 = scmp.ne.s32.totalorder %s55, %s69
      %p71 = scmp.eq.s32.totalorder %s24, 0
      %p72 = por %p70, %p71
      %s74 = sadd.s32 %s73, 1
      %p77 = scmp.eq.s32.totalorder %s18, 1
      %p78 = scmp.ne.s32.totalorder %s73, %s75
      %p79 = scmp.eq.s32.totalorder %s18, 0
      %p80 = por %p78, %p79
      %p81 = scmp.ne.s32.totalorder %s73, %s75
      %p82 = scmp.eq.s32.totalorder %s23, 1
      %p83 = por %p81, %p82
      %p84 = scmp.ne.s32.totalorder %s75, %s76
      %p85 = scmp.eq.s32.totalorder %s23, 0
      %p86 = por %p84, %p85
      %p87 = scmp.ne.s32.totalorder %s75, %s76
      %p88 = scmp.eq.s32.totalorder %s24, 1
      %p89 = por %p87, %p88
      %p91 = scmp.ne.s32.totalorder %s76, %s90
      %p92 = scmp.eq.s32.totalorder %s24, 0
      %p93 = por %p91, %p92
      %s95 = sadd.s32 %s94, 1
      %p98 = scmp.eq.s32.totalorder %s18, 1
      %p99 = scmp.ne.s32.totalorder %s94, %s96
      %p100 = scmp.eq.s32.totalorder %s18, 0
      %p101 = por %p99, %p100
      %p102 = scmp.ne.s32.totalorder %s94, %s96
      %p103 = scmp.eq.s32.totalorder %s23, 1
      %p104 = por %p102, %p103
      %p105 = scmp.ne.s32.totalorder %s96, %s97
      %p106 = scmp.eq.s32.totalorder %s23, 0
      %p107 = por %p105, %p106
      %p108 = scmp.ne.s32.totalorder %s96, %s97
      %p109 = scmp.eq.s32.totalorder %s24, 1
      %p110 = por %p108, %p109
      %p112 = scmp.ne.s32.totalorder %s97, %s111
      %p113 = scmp.eq.s32.totalorder %s24, 0
      %p114 = por %p112, %p113
      %s116 = sadd.s32 %s115, 1
      %p119 = scmp.eq.s32.totalorder %s18, 1
      %p120 = scmp.ne.s32.totalorder %s115, %s117
      %p121 = scmp.eq.s32.totalorder %s18, 0
      %p122 = por %p120, %p121
      %p123 = scmp.ne.s32.totalorder %s115, %s117
      %p124 = scmp.eq.s32.totalorder %s23, 1
      %p125 = por %p123, %p124
      %p126 = scmp.ne.s32.totalorder %s117, %s118
      %p127 = scmp.eq.s32.totalorder %s23, 0
      %p128 = por %p126, %p127
      %p129 = scmp.ne.s32.totalorder %s117, %s118
      %p130 = scmp.eq.s32.totalorder %s24, 1
      %p131 = por %p129, %p130
      %p133 = scmp.ne.s32.totalorder %s118, %s132
      %p134 = scmp.eq.s32.totalorder %s24, 0
      %p135 = por %p133, %p134
      %s136 = ssub.s32 %s18, %s25
      %p137 = scmp.eq.s32.totalorder %s136, 0
      %s139 = sadd.s32 %s138, 1
      %s140 = scalar_select %p137, %s138, %s139
      %p143 = pneg %p137
      %p144 = scmp.eq.s32.totalorder %s18, 1
      %p145 = por %p143, %p144
      %p146 = scmp.ne.s32.totalorder %s138, %s141
      %p147 = scmp.eq.s32.totalorder %s18, 0
      %p148 = por %p146, %p147
      %p149 = scmp.ne.s32.totalorder %s138, %s141
      %p150 = scmp.eq.s32.totalorder %s23, 1
      %p151 = por %p149, %p150
      %p152 = scmp.ne.s32.totalorder %s141, %s142
      %p153 = scmp.eq.s32.totalorder %s23, 0
      %p154 = por %p152, %p153
      %p155 = scmp.ne.s32.totalorder %s141, %s142
      %p156 = scmp.eq.s32.totalorder %s24, 1
      %p157 = por %p155, %p156
      %p159 = scmp.ne.s32.totalorder %s142, %s158
      %p160 = scmp.eq.s32.totalorder %s24, 0
      %p161 = por %p159, %p160
      %p162 = scmp.le.s32.totalorder 1, %s18
      %p163 = scmp.lt.s32.totalorder %s18, 3
      %p164 = pnand %p162, %p163
      %p165 = pneg %p164
      // Predicated region
      $region9: #{tpu_custom_call.1} parent=5 // pred_check
        _
      $region10: #{tpu_custom_call.1} parent=5 // pred_check_branch
        %167 = sbr.rel (%p164) target = $region12
      $region11: #{tpu_custom_call.1} parent=5 // pred_region
        %s168 = ssub.s32 %s18, 1
        // Predicated region
        $region13: #{tpu_custom_call.1} parent=11 // pred_check
          %p169 = pneg %p65
        $region14: #{tpu_custom_call.1} parent=11 // pred_check_branch
          %171 = sbr.rel (%p169) target = $region16
        $region15: #{tpu_custom_call.1} parent=11 // pred_region
          %173 = vsyncadd [#allocation6], 0
          %s174 = sshll.u32 %s1, 4
          %s175 = int_to_ptr.hbm [resolvable:$true] %s174
          %s176 = sshll.u32 [#allocation5], 4
          %s177 = int_to_ptr.vmem [resolvable:$true] %s176
          %182 = dma.hbm_to_vmem [thread:$0]  %s175, 512, %s177, [#allocation6], 64, 64, 4
        $region16: #{tpu_custom_call.1} parent=11 // pred_fallthru
          _
        // Predicated region
        $region17: #{tpu_custom_call.1} parent=11 // pred_check
          %p183 = pneg %p86
        $region18: #{tpu_custom_call.1} parent=11 // pred_check_branch
          %185 = sbr.rel (%p183) target = $region20
        $region19: #{tpu_custom_call.1} parent=11 // pred_region
          _
        $region20: #{tpu_custom_call.1} parent=11 // pred_fallthru
          _
        // Predicated region
        $region21: #{tpu_custom_call.1} parent=11 // pred_check
          %p186 = pneg %p107
        $region22: #{tpu_custom_call.1} parent=11 // pred_check_branch
          %188 = sbr.rel (%p186) target = $region24
        $region23: #{tpu_custom_call.1} parent=11 // pred_region
          _
        $region24: #{tpu_custom_call.1} parent=11 // pred_fallthru
          _
        // Predicated region
        $region25: #{tpu_custom_call.1} parent=11 // pred_check
          %p189 = pneg %p128
        $region26: #{tpu_custom_call.1} parent=11 // pred_check_branch
          %191 = sbr.rel (%p189) target = $region28
        $region27: #{tpu_custom_call.1} parent=11 // pred_region
          _
        $region28: #{tpu_custom_call.1} parent=11 // pred_fallthru
          _
      $region12: #{tpu_custom_call.1} parent=5 // pred_fallthru
        _
      %p192 = scmp.lt.s32.totalorder %s18, 2
      // Predicated region
      $region29: #{tpu_custom_call.1} parent=5 // pred_check
        %p193 = pneg %p192
      $region30: #{tpu_custom_call.1} parent=5 // pred_check_branch
        %195 = sbr.rel (%p193) target = $region32
      $region31: #{tpu_custom_call.1} parent=5 // pred_region
        // Predicated region
        $region33: #{tpu_custom_call.1} parent=31 // pred_check
          %p196 = pneg %p38
        $region34: #{tpu_custom_call.1} parent=31 // pred_check_branch
          %198 = sbr.rel (%p196) target = $region36
        $region35: #{tpu_custom_call.1} parent=31 // pred_region
          %s199 = sand.u32 %s28, 1
          %s200 = scalar_lea.sflag [#allocation3], %s199
          %s201 = sand.u32 %s28, 1
          %s202 = smul.addr %s201, 4
          %s203 = scalar_lea.vmem [#allocation2], %s202
          %205 = vsyncadd %s200, 0
          %s206 = smul.addr %s18, 4
          %s207 = scalar_lea.hbm %s0, %s206
          %s209 = sshll.u32 %s207, 4
          %s210 = int_to_ptr.hbm [resolvable:$true] %s209
          %s211 = sshll.u32 %s203, 4
          %s212 = int_to_ptr.vmem [resolvable:$true] %s211
          %214 = dma.hbm_to_vmem [thread:$0]  %s210, 64, %s212, %s200
        $region36: #{tpu_custom_call.1} parent=31 // pred_fallthru
          _
      $region32: #{tpu_custom_call.1} parent=5 // pred_fallthru
        _
      %p215 = scmp.le.s32.totalorder 1, %s18
      %p216 = scmp.lt.s32.totalorder %s18, 3
      %p217 = pnand %p215, %p216
      %p218 = pneg %p217
      // Predicated region
      $region37: #{tpu_custom_call.1} parent=5 // pred_check
        _
      $region38: #{tpu_custom_call.1} parent=5 // pred_check_branch
        %220 = sbr.rel (%p217) target = $region40
      $region39: #{tpu_custom_call.1} parent=5 // pred_region
        %s221 = ssub.s32 %s18, 1
        %s222 = sand.u32 %s31, 1
        %s223 = scalar_lea.sflag [#allocation3], %s222
        %s224 = sand.u32 %s31, 1
        %s225 = smul.addr %s224, 4
        %s226 = scalar_lea.vmem [#allocation2], %s225
        // Predicated region
        $region41: #{tpu_custom_call.1} parent=39 // pred_check
          %p227 = pneg %p44
        $region42: #{tpu_custom_call.1} parent=39 // pred_check_branch
          %229 = sbr.rel (%p227) target = $region44
        $region43: #{tpu_custom_call.1} parent=39 // pred_region
          %231 = dma.done %s223, 64
        $region44: #{tpu_custom_call.1} parent=39 // pred_fallthru
          _
        // Predicated region
        $region45: #{tpu_custom_call.1} parent=39 // pred_check
          %p232 = pneg %p65
        $region46: #{tpu_custom_call.1} parent=39 // pred_check_branch
          %234 = sbr.rel (%p232) target = $region48
        $region47: #{tpu_custom_call.1} parent=39 // pred_region
          %236 = dma.done [#allocation6], 512
        $region48: #{tpu_custom_call.1} parent=39 // pred_fallthru
          _
        %s237 = sand.u32 %s31, 1
        %s238 = scalar_lea.sflag [#allocation3], %s237
        %s239 = sand.u32 %s31, 1
        %s240 = smul.addr %s239, 4
        %s241 = scalar_lea.vmem [#allocation2], %s240
        %p242 = pneg %p44
        %p243 = pneg %p41
        %p244 = pneg %p65
        %p245 = pneg %p62
        %p246 = pneg %p86
        %p247 = pneg %p83
        %p248 = pneg %p107
        %p249 = pneg %p104
        %p250 = pneg %p128
        %p251 = pneg %p125
        %p252 = pneg %p154
        %p253 = pneg %p151
        %s254 = sand.u32 %s141, 1
        %s255 = scalar_lea.sflag [#allocation4], %s254
        %s256 = sand.u32 %s141, 1
        %s257 = smul.addr %s256, 8
        %s258 = scalar_lea.vmem [#allocation7], %s257
        %v260 = vld [vmem:[%s226] sm:$0xf]
        %v261 = vld [vmem:[#allocation5] sm:$0xf]
        %v262 = vld [vmem:[#allocation5 + $0x4] sm:$0xf]
        %v263 = vld [vmem:[#allocation5 + $0x8] sm:$0xf]
        %v264 = vld [vmem:[#allocation5 + $0xc] sm:$0xf]
        %v265 = vld [vmem:[#allocation5 + $0x10] sm:$0xf]
        %v266 = vld [vmem:[#allocation5 + $0x14] sm:$0xf]
        %v267 = vld [vmem:[#allocation5 + $0x18] sm:$0xf]
        %v268 = vld [vmem:[#allocation5 + $0x1c] sm:$0xf]
        %v269 = vld [vmem:[%s2] sm:$0x1]
        %v271 = vperm.slane %v269, 0
        %v281 = vunpack.c.l.b16 %v261
        %v282 = vunpack.c.l.b16 %v262
        %v283 = vunpack.c.l.b16 %v263
        %v284 = vunpack.c.l.b16 %v264
        %v285 = vunpack.c.l.b16 %v265
        %v286 = vunpack.c.l.b16 %v266
        %v287 = vunpack.c.l.b16 %v267
        %v288 = vunpack.c.l.b16 %v268
        %v289 = vpack.c.b16 %v282, %v281
        %v290 = vpack.c.b16 %v284, %v283
        %v291 = vpack.c.b16 %v286, %v285
        %v292 = vpack.c.b16 %v288, %v287
        %vm297 = vcmask 523264
        %v299 = vsel %vm297, %v260, 0
        %301 = vmatpush.bf16.msra.mxu0 0
        %302 = vmatpush.bf16.msra.mxu0 0
        %303 = vmatpush.bf16.msra.mxu0 0
        %304 = vmatpush.bf16.msra.mxu0 0
        %305 = vmatpush.bf16.msra.mxu0 %v292
        %306 = vmatpush.bf16.msra.mxu0 %v291
        %307 = vmatpush.bf16.msra.mxu0 %v290
        %308 = vmatpush.bf16.msra.mxu0 %v289
        %309 = vmatmul.bf16.gmra.mxu0 %v299
        %v310 = vpop.f32.mrf.mxu0
        %v311 = vadd.f32 %v271, %v310
        %v312 = vpop.f32.mrf.mxu0
        %313 = vdwg.mxu0
        %v314 = vlaneseq
        %v315 = vand.u32 %v314, 127
        %vm316 = vcmp.lt.s32.totalorder %v315, 96
        %v317 = vsel %vm316, 1, 0
        %v318 = vcvt.s32.f32 %v317
        %v319 = vmul.f32 %v311, %v318
        %320 = vadd.xlane.f32.xlu0 %v319
        %v321 = vpop.xlane.xlu0 %320
        %v322 = vmul.f32 %v321, 0.010416667
        %v323 = vsub.f32 %v311, %v322
        %v324 = vmul.f32 %v323, %v318
        %v325 = vmul.f32 %v324, %v324
        %326 = vadd.xlane.f32.xlu0 %v325
        %v327 = vpop.xlane.xlu0 %326
        %v328 = vmul.f32 %v327, 0.010416667
        %v329 = vadd.f32 %v328, 1e-05
        %v330 = vrsqrt.pop %v329
        %v331 = vmul.f32 %v330, %v329
        %v332 = vmul.f32 %v331, %v330
        %v333 = vmul.f32 0.5, %v332
        %v334 = vsub.f32 1.5, %v333
        %v335 = vmul.f32 %v330, %v334
        %vm336 = vweird.f32 %v329
        %vm337 = vweird.f32 %v330
        %vm338 = vmor %vm336, %vm337
        %v339 = vsel %vm338, %v330, %v335
        %v340 = vmul.f32 %v324, %v339
        %v341 = vld [vmem:[%s3] sm:$0x1]
        %v343 = vperm.slane %v341, 0
        %v345 = vmul.f32 %v340, %v343
        %v346 = vld [vmem:[%s4] sm:$0x1]
        %v348 = vperm.slane %v346, 0
        %v350 = vadd.f32 %v345, %v348
        %351 = vst [vmem:[%s258] sm:$0xff] %v350
        %s352 = sand.u32 %s141, 1
        %s353 = scalar_lea.sflag [#allocation4], %s352
        %s354 = sand.u32 %s141, 1
        %s355 = smul.addr %s354, 8
        %s356 = scalar_lea.vmem [#allocation7], %s355
        // Predicated region
        $region49: #{tpu_custom_call.1} parent=39 // pred_check
          %p357 = pneg %p151
        $region50: #{tpu_custom_call.1} parent=39 // pred_check_branch
          %359 = sbr.rel (%p357) target = $region52
        $region51: #{tpu_custom_call.1} parent=39 // pred_region
          %361 = vsyncadd %s353, 0
          %s362 = smul.addr %s23, 8
          %s363 = scalar_lea.hbm %s5, %s362
          %s365 = sshll.u32 %s356, 4
          %s366 = int_to_ptr.vmem [resolvable:$true] %s365
          %s367 = sshll.u32 %s363, 4
          %s368 = int_to_ptr.hbm [resolvable:$true] %s367
          %370 = dma.vmem_to_hbm [thread:$0]  %s366, 128, %s368, %s353
        $region52: #{tpu_custom_call.1} parent=39 // pred_fallthru
          _
      $region40: #{tpu_custom_call.1} parent=5 // pred_fallthru
        _
      %p371 = scmp.le.s32.totalorder 2, %s18
      // Predicated region
      $region53: #{tpu_custom_call.1} parent=5 // pred_check
        %p372 = pneg %p371
      $region54: #{tpu_custom_call.1} parent=5 // pred_check_branch
        %374 = sbr.rel (%p372) target = $region56
      $region55: #{tpu_custom_call.1} parent=5 // pred_region
        %s375 = ssub.s32 %s18, 2
        // Predicated region
        $region57: #{tpu_custom_call.1} parent=55 // pred_check
          %p376 = pneg %p157
        $region58: #{tpu_custom_call.1} parent=55 // pred_check_branch
          %378 = sbr.rel (%p376) target = $region60
        $region59: #{tpu_custom_call.1} parent=55 // pred_region
          %s379 = sand.u32 %s142, 1
          %s380 = scalar_lea.sflag [#allocation4], %s379
          %s381 = sand.u32 %s142, 1
          %s382 = smul.addr %s381, 8
          %s383 = scalar_lea.vmem [#allocation7], %s382
          %385 = dma.done %s380, 128
        $region60: #{tpu_custom_call.1} parent=55 // pred_fallthru
          _
      $region56: #{tpu_custom_call.1} parent=5 // pred_fallthru
        _
    $region6: #{tpu_custom_call.1} parent=1 // loop_footer
      %s22 = sadd.s32 1, %s18
    $region7: #{tpu_custom_call.1} parent=1 // loop_footer_branch
      %17 = sbr.rel target = $region3
    $region8: #{tpu_custom_call.1} parent=1 // loop_exit
      _
    %386 = vsyncpa [#allocation3], 1
    %s387 = scalar_lea.sflag [#allocation3], 1
    %388 = vsyncpa %s387, 1
    %389 = vsyncpa [#allocation6], 1
    %390 = vsyncpa [#allocation4], 1
    %s391 = scalar_lea.sflag [#allocation4], 1
    %392 = vsyncpa %s391, 1

</llo_original>
